<compile_context>
chip_gen: v7x
topology: tpu7x:2x2x1
jax: 0.10.0
libtpu: 0.0.40
codegen_flags: <defaults>
</compile_context>

<pallas_src>
import functools

import jax
import jax.numpy as jnp
from jax.experimental import pallas as pl
from jax.experimental.pallas import tpu as pltpu

_LANES = 128


def _round_up(x, m):
    return (x + m - 1) // m * m


def _lane_chunk_sum(x):
    """Fold (TB, TL) -> (TB, 128) with pure 128-lane VPU adds (no XLU)."""
    tb, tl = x.shape
    acc = x[:, :_LANES]
    for c in range(1, tl // _LANES):
        acc = acc + x[:, c * _LANES:(c + 1) * _LANES]
    return acc


def _bce_rowmean_kernel(x_ref, y_ref, w_ref, out_ref, acc_ref, *,
                        true_l, tile_l, ragged_l, inv_len):
    """One (TB, TL) tile: accumulate masked BCE row partial sums over the L
    grid axis; emit the per-row mean (divided by the TRUE L) at the last step."""
    k = pl.program_id(1)

    @pl.when(k == 0)
    def _():
        acc_ref[...] = jnp.zeros_like(acc_ref)

    # Cast in-VMEM so HBM reads stay in the caller's (possibly narrow) dtype.
    x = x_ref[...].astype(jnp.float32)
    y = y_ref[...].astype(jnp.float32)
    w = w_ref[...].astype(jnp.float32)

    if ragged_l:
        # In-kernel ragged-edge handling (replaces wrapper-side jnp.pad).
        # Zero x/y/w BEFORE exp/log: garbage in the partial edge tile must not
        # turn into inf/NaN contributions.
        col = k * tile_l + jax.lax.broadcasted_iota(jnp.int32, x.shape, 1)
        valid = col < true_l
        x = jnp.where(valid, x, 0.0)
        y = jnp.where(valid, y, 0.0)
        w = jnp.where(valid, w, 0.0)

    # Numerically stable BCE with logits (same math as
    # torch.nn.functional.binary_cross_entropy_with_logits, weight=mask):
    #   loss = max(x, 0) - x*y + log(1 + exp(-|x|))
    per_elem = jnp.maximum(x, 0.0) - x * y + jnp.log(1.0 + jnp.exp(-jnp.abs(x)))

    # Lane-dense accumulation: (TB, 128) partial sums, pure VPU adds per step.
    acc_ref[...] += _lane_chunk_sum(w * per_elem)

    @pl.when(k == pl.num_programs(1) - 1)
    def _():
        # Cross-lane reduce + divide by the TRUE (unmasked) L, exactly once.
        out_ref[...] = jnp.sum(acc_ref[...], axis=1, keepdims=True) * inv_len


def sigmoid_bce_loss(inputs, targets, mask, *, tb=256, tl=2048):
    """Pallas TPU SigmoidBinaryCrossEntropyLoss.

    inputs, targets, mask: (batch, len).  Hand in narrow storage dtypes
    (bf16 / int8 / bool) directly -- they are cast to f32 inside the kernel,
    so upstream .astype(float32) would only add HBM traffic.
    Returns (batch,) f32 per-row mean of mask-weighted BCE-with-logits
    (mean over the full `len`, not a masked mean -- matches the torch module).
    """
    B, L = inputs.shape
    assert targets.shape == (B, L) and mask.shape == (B, L)
    assert B >= 1 and L >= 1

    # Sublane multiple for the narrowest HBM dtype (f32:8, bf16:16, i8/bool:32).
    min_item = min(jnp.dtype(a.dtype).itemsize for a in (inputs, targets, mask))
    sub = {4: 8, 2: 16, 1: 32}.get(min_item, 8)

    # Lane tile: big (amortize per-grid-step overhead), multiple of 128,
    # no larger than needed for L.
    TL = min(_round_up(tl, _LANES), _round_up(L, _LANES))

    # Batch tile: multiple of `sub`; guarantee >=2 batch tiles when B allows so
    # the 'parallel' batch axis can feed both TensorCores on v7x.
    TB = min(_round_up(tb, sub), _round_up(B, sub))
    if B >= 2 * sub:
        TB = min(TB, _round_up(pl.cdiv(B, 2), sub))

    grid = (pl.cdiv(B, TB), pl.cdiv(L, TL))

    # Scoped-VMEM budget: double-buffered input blocks + headroom for
    # elementwise temporaries.  32-48 MiB is safe on v5e/v6e (128 MiB phys)
    # and v7x (64 MiB phys), and covers v5e's 16 MiB scoped default.
    bytes_per_elem = sum(jnp.dtype(a.dtype).itemsize
                         for a in (inputs, targets, mask))
    dbl_buf = 2 * TB * TL * bytes_per_elem
    vmem_limit = int(min(max(dbl_buf + (24 << 20), 32 << 20), 48 << 20))

    kernel = functools.partial(
        _bce_rowmean_kernel,
        true_l=L, tile_l=TL, ragged_l=(L % TL) != 0, inv_len=float(1.0 / L))

    out = pl.pallas_call(
        kernel,
        out_shape=jax.ShapeDtypeStruct((B, 1), jnp.float32),
        grid_spec=pltpu.PrefetchScalarGridSpec(
            num_scalar_prefetch=0,
            grid=grid,
            in_specs=[
                pl.BlockSpec((TB, TL), lambda i, k: (i, k)),
                pl.BlockSpec((TB, TL), lambda i, k: (i, k)),
                pl.BlockSpec((TB, TL), lambda i, k: (i, k)),
            ],
            out_specs=pl.BlockSpec((TB, 1), lambda i, k: (i, 0)),
            scratch_shapes=[pltpu.VMEM((TB, _LANES), jnp.float32)],
        ),
        compiler_params=pltpu.CompilerParams(
            # Batch tiles are independent ('parallel' -> megacore on v7x);
            # L is the resident-accumulator reduction axis ('arbitrary', last).
            dimension_semantics=("parallel", "arbitrary"),
            vmem_limit_bytes=vmem_limit,
        ),
    )(inputs, targets, mask)
    return out[:, 0]


def _reference(inputs, targets, mask):
    x = inputs.astype(jnp.float32)
    y = targets.astype(jnp.float32)
    w = mask.astype(jnp.float32)
    loss = jnp.maximum(x, 0.0) - x * y + jnp.log(1.0 + jnp.exp(-jnp.abs(x)))
    return jnp.mean(w * loss, axis=1)


if __name__ == "__main__":
    # --- Small shapes from the module spec: (batch_size, len) = (2, 8). ---
    key = jax.random.PRNGKey(0)
    k1, k2, k3 = jax.random.split(key, 3)
    batch, seq = 2, 8
    inputs = jax.random.normal(k1, (batch, seq), dtype=jnp.float32)
    targets = (jax.random.uniform(k2, (batch, seq)) > 0.5).astype(jnp.float32)
    mask = (jax.random.uniform(k3, (batch, seq)) > 0.25).astype(jnp.float32)

    out = sigmoid_bce_loss(inputs, targets, mask)
    jax.block_until_ready(out)
    ref = _reference(inputs, targets, mask)
    assert out.shape == (batch,)
    assert jnp.allclose(out, ref, atol=1e-5, rtol=1e-5), (out, ref)

    # --- Ragged B/L + narrow-dtype + multi-tile exercise (in-kernel edge
    #     masking, >=2 batch tiles, bf16 operands kept narrow in HBM). ---
    k4, k5, k6 = jax.random.split(jax.random.PRNGKey(1), 3)
    b2, l2 = 40, 300
    x2 = jax.random.normal(k4, (b2, l2), dtype=jnp.bfloat16)
    y2 = (jax.random.uniform(k5, (b2, l2)) > 0.5).astype(jnp.bfloat16)
    m2 = (jax.random.uniform(k6, (b2, l2)) > 0.25).astype(jnp.float32)
    out2 = sigmoid_bce_loss(x2, y2, m2, tl=128)
    jax.block_until_ready(out2)
    ref2 = _reference(x2, y2, m2)
    assert out2.shape == (b2,)
    assert jnp.allclose(out2, ref2, atol=1e-4, rtol=1e-4), (out2, ref2)

    print("KERNEL_OK")
</pallas_src>

<mosaic_0001>
module attributes {stable_mosaic.version = 11 : i64} {
  func.func @_bce_rowmean_kernel(%arg0: i32, %arg1: i32, %arg2: memref<8x128xf32, #tpu.memory_space<vmem>>, %arg3: memref<8x128xf32, #tpu.memory_space<vmem>>, %arg4: memref<8x128xf32, #tpu.memory_space<vmem>>, %arg5: memref<8x1xf32, #tpu.memory_space<vmem>>, %arg6: memref<8x128xf32, #tpu.memory_space<vmem>>) attributes {dimension_semantics = [#tpu.dimension_semantics<parallel>, #tpu.dimension_semantics<arbitrary>], iteration_bounds = array<i64: 1, 1>, scalar_prefetch = 0 : i64, scratch_operands = 1 : i64, tpu.core_type = #tpu.core_type<tc>, window_params = [{transform_indices = @transform_0, window_bounds = array<i64: 8, 128>}, {transform_indices = @transform_1, window_bounds = array<i64: 8, 128>}, {transform_indices = @transform_2, window_bounds = array<i64: 8, 128>}, {transform_indices = @transform_3, window_bounds = array<i64: 8, 1>}]} {
    %c0_i32 = arith.constant 0 : i32
    %0 = arith.cmpi eq, %arg1, %c0_i32 : i32
    %1 = arith.extui %0 : i1 to i32
    %c0_i32_0 = arith.constant 0 : i32
    %2 = arith.cmpi ne, %1, %c0_i32_0 : i32
    scf.if %2 {
      %cst_17 = arith.constant 0.000000e+00 : f32
      %37 = vector.broadcast %cst_17 : f32 to vector<8x128xf32>
      %c0_18 = arith.constant 0 : index
      %c0_19 = arith.constant 0 : index
      %38 = vector.load %arg6[%c0_18, %c0_19] : memref<8x128xf32, #tpu.memory_space<vmem>>, vector<8x128xf32>
      tpu.vector_store %arg6[%c0_18, %c0_19], %37 {strides = array<i32>} : memref<8x128xf32, #tpu.memory_space<vmem>>, vector<8x128xf32>,
    } else {
    }
    %c0 = arith.constant 0 : index
    %c0_1 = arith.constant 0 : index
    %3 = vector.load %arg2[%c0, %c0_1] : memref<8x128xf32, #tpu.memory_space<vmem>>, vector<8x128xf32>
    %c0_2 = arith.constant 0 : index
    %c0_3 = arith.constant 0 : index
    %4 = vector.load %arg3[%c0_2, %c0_3] : memref<8x128xf32, #tpu.memory_space<vmem>>, vector<8x128xf32>
    %c0_4 = arith.constant 0 : index
    %c0_5 = arith.constant 0 : index
    %5 = vector.load %arg4[%c0_4, %c0_5] : memref<8x128xf32, #tpu.memory_space<vmem>>, vector<8x128xf32>
    %c128_i32 = arith.constant 128 : i32
    %6 = arith.muli %arg1, %c128_i32 : i32
    %7 = tpu.iota {dimensions = array<i32: 1>} : vector<8x128xi32>
    %8 = vector.broadcast %6 : i32 to vector<8x128xi32>
    %9 = arith.addi %8, %7 : vector<8x128xi32>
    %c8_i32 = arith.constant 8 : i32
    %10 = vector.broadcast %c8_i32 : i32 to vector<8x128xi32>
    %11 = arith.cmpi slt, %9, %10 : vector<8x128xi32>
    %cst = arith.constant 0.000000e+00 : f32
    %12 = vector.broadcast %cst : f32 to vector<8x128xf32>
    %13 = arith.select %11, %3, %12 : vector<8x128xi1>, vector<8x128xf32>
    %cst_6 = arith.constant 0.000000e+00 : f32
    %14 = vector.broadcast %cst_6 : f32 to vector<8x128xf32>
    %15 = arith.select %11, %4, %14 : vector<8x128xi1>, vector<8x128xf32>
    %cst_7 = arith.constant 0.000000e+00 : f32
    %16 = vector.broadcast %cst_7 : f32 to vector<8x128xf32>
    %17 = arith.select %11, %5, %16 : vector<8x128xi1>, vector<8x128xf32>
    %cst_8 = arith.constant 0.000000e+00 : f32
    %18 = vector.broadcast %cst_8 : f32 to vector<8x128xf32>
    %19 = arith.maximumf %13, %18 : vector<8x128xf32>
    %20 = arith.mulf %13, %15 : vector<8x128xf32>
    %21 = arith.subf %19, %20 : vector<8x128xf32>
    %22 = math.absf %13 : vector<8x128xf32>
    %cst_9 = arith.constant 0.000000e+00 : f32
    %23 = vector.broadcast %cst_9 : f32 to vector<8x128xf32>
    %24 = arith.subf %23, %22 : vector<8x128xf32>
    %25 = math.exp %24 : vector<8x128xf32>
    %cst_10 = arith.constant 1.000000e+00 : f32
    %26 = vector.broadcast %cst_10 : f32 to vector<8x128xf32>
    %27 = arith.addf %26, %25 : vector<8x128xf32>
    %28 = math.log %27 : vector<8x128xf32>
    %29 = arith.addf %21, %28 : vector<8x128xf32>
    %c0_11 = arith.constant 0 : index
    %c0_12 = arith.constant 0 : index
    %30 = vector.load %arg6[%c0_11, %c0_12] : memref<8x128xf32, #tpu.memory_space<vmem>>, vector<8x128xf32>
    %31 = arith.mulf %17, %29 : vector<8x128xf32>
    %32 = arith.addf %30, %31 : vector<8x128xf32>
    %c0_13 = arith.constant 0 : index
    %c0_14 = arith.constant 0 : index
    %33 = vector.load %arg6[%c0_13, %c0_14] : memref<8x128xf32, #tpu.memory_space<vmem>>, vector<8x128xf32>
    tpu.vector_store %arg6[%c0_13, %c0_14], %32 {strides = array<i32>} : memref<8x128xf32, #tpu.memory_space<vmem>>, vector<8x128xf32>,
    %c0_i32_15 = arith.constant 0 : i32
    %34 = arith.cmpi eq, %arg1, %c0_i32_15 : i32
    %35 = arith.extui %34 : i1 to i32
    %c0_i32_16 = arith.constant 0 : i32
    %36 = arith.cmpi ne, %35, %c0_i32_16 : i32
    scf.if %36 {
      %c0_17 = arith.constant 0 : index
      %c0_18 = arith.constant 0 : index
      %37 = vector.load %arg6[%c0_17, %c0_18] : memref<8x128xf32, #tpu.memory_space<vmem>>, vector<8x128xf32>
      %cst_19 = arith.constant dense<0.000000e+00> : vector<8xf32>
      %38 = vector.multi_reduction <add>, %37, %cst_19 [1] : vector<8x128xf32> to vector<8xf32>
      %39 = vector.shape_cast %38 : vector<8xf32> to vector<8x1xf32>
      %cst_20 = arith.constant 1.250000e-01 : f32
      %40 = vector.broadcast %cst_20 : f32 to vector<8x1xf32>
      %41 = arith.mulf %39, %40 : vector<8x1xf32>
      %c0_21 = arith.constant 0 : index
      %c0_22 = arith.constant 0 : index
      %42 = vector.load %arg5[%c0_21, %c0_22] : memref<8x1xf32, #tpu.memory_space<vmem>>, vector<8x1xf32>
      tpu.vector_store %arg5[%c0_21, %c0_22], %41 {strides = array<i32>} : memref<8x1xf32, #tpu.memory_space<vmem>>, vector<8x1xf32>,
    } else {
    }
    return
  }
  func.func @transform_0(%arg0: i32, %arg1: i32) -> (i32, i32) {
    %c0_i32 = arith.constant 0 : i32
    return %arg0, %arg1 : i32, i32
  }
  func.func @transform_1(%arg0: i32, %arg1: i32) -> (i32, i32) {
    %c0_i32 = arith.constant 0 : i32
    return %arg0, %arg1 : i32, i32
  }
  func.func @transform_2(%arg0: i32, %arg1: i32) -> (i32, i32) {
    %c0_i32 = arith.constant 0 : i32
    return %arg0, %arg1 : i32, i32
  }
  func.func @transform_3(%arg0: i32, %arg1: i32) -> (i32, i32) {
    %c0_i32 = arith.constant 0 : i32
    %c0_i32_0 = arith.constant 0 : i32
    return %arg0, %c0_i32 : i32, i32
  }
}

</mosaic_0001>

<llo_original>
// kernel: tpu_custom_call.1
$region0: #{tpu_custom_call.1}
  #allocation0 [shape = 'u32[]', space=smem, size = 0x4, offset = 0x4, fixed_abs, tag = 'smem constant byte address 0x4 - core index']
  #allocation1 [shape = 'u32[144,128]{1,0:T(1,128)}', space=vmem, size = 0x12000, scoped, tag = 'internal scratch']
  #allocation2 [shape = 'f32[8,128]{1,0:T(8,128)}', space=vmem, size = 0x1000, scoped, tag = 'scratch operand']
  %s0 = inlined_call_operand.hbm [shape: f32[2,8], index: 0, kind: input, shape index: {}]
  %s1 = inlined_call_operand.vmem [shape: f32[2,8], index: 1, kind: input, shape index: {}]
  %s2 = inlined_call_operand.vmem [shape: f32[2,8], index: 2, kind: input, shape index: {}]
  %s3 = inlined_call_operand.vmem [shape: f32[2,1], index: 3, kind: output, shape index: {}]
  %s4 = sld [smem:[#allocation0]]
  $region64: #{tpu_custom_call.1} parent=0
    _
  %s6 = ssub.s32 1, %s4
  %s7 = scalar_select 0, %s6, %s4
  $region1: #{tpu_custom_call.1} parent=0
    #allocation3 [shape = 'u8[4096]{0}', space=vmem, size = 0x1000, scoped, tag = 'input window, operand 0, single buffered']
    #allocation4 [shape = 's32[1]{0}', space=sflag, size = 0x4, scoped, tag = 'scoped memory for tpu_custom_call.1']
    #allocation5 [shape = 'u8[4096]{0}', space=vmem, size = 0x1000, scoped, tag = 'output window, operand 0, single buffered']
    %8 = vsyncpa [#allocation4], 0
    // Predicated region
    $region2: #{tpu_custom_call.1} parent=1 // pred_check
      _
    $region3: #{tpu_custom_call.1} parent=1 // pred_check_branch
      %10 = sbr.rel (0) target = $region5
    $region4: #{tpu_custom_call.1} parent=1 // pred_region
      %s12 = ssub.s32 128, 32
      %13 = vsyncadd [#allocation4], %s12
      %s14 = sshll.u32 [#allocation3], 4
      %s15 = int_to_ptr.vmem [resolvable:$true] %s14
      %20 = dma.hbm_to_vmem [thread:$0]  %s0, 32, %s15, [#allocation4], 32, 32, 2
    $region5: #{tpu_custom_call.1} parent=1 // pred_fallthru
      _
    // Predicated region
    $region6: #{tpu_custom_call.1} parent=1 // pred_check
      _
    $region7: #{tpu_custom_call.1} parent=1 // pred_check_branch
      %22 = sbr.rel (0) target = $region9
    $region8: #{tpu_custom_call.1} parent=1 // pred_region
      _
    $region9: #{tpu_custom_call.1} parent=1 // pred_fallthru
      _
    // Predicated region
    $region10: #{tpu_custom_call.1} parent=1 // pred_check
      _
    $region11: #{tpu_custom_call.1} parent=1 // pred_check_branch
      %24 = sbr.rel (0) target = $region13
    $region12: #{tpu_custom_call.1} parent=1 // pred_region
      _
    $region13: #{tpu_custom_call.1} parent=1 // pred_fallthru
      _
    // Predicated region
    $region14: #{tpu_custom_call.1} parent=1 // pred_check
      _
    $region15: #{tpu_custom_call.1} parent=1 // pred_check_branch
      %26 = sbr.rel (0) target = $region17
    $region16: #{tpu_custom_call.1} parent=1 // pred_region
      %27 = dma.done [#allocation4], 128
    $region17: #{tpu_custom_call.1} parent=1 // pred_fallthru
      _
    %p28 = scmp.eq.s32.totalorder 0, 0
    // Predicated region
    $region18: #{tpu_custom_call.1} parent=1 // pred_check
      %p29 = pneg %p28
    $region19: #{tpu_custom_call.1} parent=1 // pred_check_branch
      %31 = sbr.rel (%p29) target = $region21
    $region20: #{tpu_custom_call.1} parent=1 // pred_region
      %32 = vst [vmem:[#allocation2] sm:$0xff] 0.0
    $region21: #{tpu_custom_call.1} parent=1 // pred_fallthru
      _
    %v33 = vld [vmem:[#allocation3] sm:$0xff]
    %v34 = vld [vmem:[%s1] sm:$0xff]
    %v35 = vld [vmem:[%s2] sm:$0xff]
    %s36 = smul.u32 0, 128
    %v37 = vlaneseq
    %v38 = vand.u32 %v37, 127
    %v39 = vstv %s36
    %v40 = vadd.s32 %v39, %v38
    %vm41 = vcmp.lt.s32.totalorder %v40, 8
    %v42 = vsel %vm41, %v33, 0.0
    %v43 = vsel %vm41, %v34, 0.0
    %v44 = vsel %vm41, %v35, 0.0
    %v45 = vmax.f32 %v42, 0.0
    %v46 = vmul.f32 %v42, %v43
    %v47 = vsub.f32 %v45, %v46
    %v48 = vand.u32 2147483647, %v42
    %v49 = vsub.f32 0.0, %v48
    %v50 = vmul.f32 %v49, 1.442695
    %v51 = vpow.pop %v50
    %v52 = vadd.f32 %v51, 1.0
    %v53 = vlog2.pop %v52
    %v54 = vmul.f32 %v53, 0.6931472
    %v55 = vadd.f32 %v47, %v54
    %v56 = vld [vmem:[#allocation2] sm:$0xff]
    %v57 = vmul.f32 %v44, %v55
    %v58 = vadd.f32 %v56, %v57
    %59 = vst [vmem:[#allocation2] sm:$0xff] %v58
    // Predicated region
    $region22: #{tpu_custom_call.1} parent=1 // pred_check
      %p60 = pneg %p28
    $region23: #{tpu_custom_call.1} parent=1 // pred_check_branch
      %62 = sbr.rel (%p60) target = $region25
    $region24: #{tpu_custom_call.1} parent=1 // pred_region
      %v63 = vld [vmem:[#allocation2] sm:$0xff]
      %64 = vadd.xlane.f32.xlu0 %v63
      %v65 = vpop.xlane.xlu0 %64
      %v66 = vmul.f32 %v65, 0.125
      %vm67 = vcmask 7168
      %68 = vst.msk [vmem:[#allocation5] sm:$0xff] %vm67, %v66
    $region25: #{tpu_custom_call.1} parent=1 // pred_fallthru
      _
    // Predicated region
    $region26: #{tpu_custom_call.1} parent=1 // pred_check
      _
    $region27: #{tpu_custom_call.1} parent=1 // pred_check_branch
      %70 = sbr.rel (0) target = $region29
    $region28: #{tpu_custom_call.1} parent=1 // pred_region
      // Predicated region
      $region30: #{tpu_custom_call.1} parent=28 // pred_check
        _
      $region31: #{tpu_custom_call.1} parent=28 // pred_check_branch
        %72 = sbr.rel (0) target = $region33
      $region32: #{tpu_custom_call.1} parent=28 // pred_region
        // Predicated region
        $region34: #{tpu_custom_call.1} parent=32 // pred_check
          _
        $region35: #{tpu_custom_call.1} parent=32 // pred_check_branch
          %74 = sbr.rel target = $region37
        $region36: #{tpu_custom_call.1} parent=32 // pred_region
          // Predicated region
          $region49: #{tpu_custom_call.1} parent=36 // pred_check
            _
          $region50: #{tpu_custom_call.1} parent=36 // pred_check_branch
            %89 = sbr.rel (0) target = $region52
          $region51: #{tpu_custom_call.1} parent=36 // pred_region
            loop: start=0, step=1, limit=1
            $region53: #{tpu_custom_call.1} parent=51 // loop_pre_header
              _
            $region54: #{tpu_custom_call.1} parent=51 // loop_header
              %s92 = sphi 0, %s96
              %p93 = scmp.ge.s32.totalorder %s92, 1
              %s97 = sphi [#allocation5], [#allocation5]
              %s98 = sphi %s3, %s3
            $region55: #{tpu_custom_call.1} parent=51 // loop_header_branch
              %95 = sbr.rel (%p93) target = $region59
            $region56: #{tpu_custom_call.1} parent=51 // loop_body
              %v99 = vld [vmem:[%s97] sm:$0x3]
              %100 = vst [vmem:[%s98] sm:$0x3] %v99
            $region57: #{tpu_custom_call.1} parent=51 // loop_footer
              %s96 = sadd.s32 1, %s92
            $region58: #{tpu_custom_call.1} parent=51 // loop_footer_branch
              %91 = sbr.rel target = $region54
            $region59: #{tpu_custom_call.1} parent=51 // loop_exit
              _
          $region52: #{tpu_custom_call.1} parent=36 // pred_fallthru
            _
        $region37: #{tpu_custom_call.1} parent=32 // pred_fallthru
          _
        // Predicated region
        $region38: #{tpu_custom_call.1} parent=32 // pred_check
          _
        $region39: #{tpu_custom_call.1} parent=32 // pred_check_branch
          %76 = sbr.rel (0) target = $region41
        $region40: #{tpu_custom_call.1} parent=32 // pred_region
          loop: start=0, step=1, limit=1
          $region42: #{tpu_custom_call.1} parent=40 // loop_pre_header
            _
          $region43: #{tpu_custom_call.1} parent=40 // loop_header
            %s79 = sphi 0, %s83
            %p80 = scmp.ge.s32.totalorder %s79, 1
            %s84 = sphi [#allocation5], [#allocation5]
            %s85 = sphi %s3, %s3
          $region44: #{tpu_custom_call.1} parent=40 // loop_header_branch
            %82 = sbr.rel (%p80) target = $region48
          $region45: #{tpu_custom_call.1} parent=40 // loop_body
            %v86 = vld [vmem:[%s84] sm:$0x3]
            %87 = vst [vmem:[%s85] sm:$0x3] %v86
          $region46: #{tpu_custom_call.1} parent=40 // loop_footer
            %s83 = sadd.s32 1, %s79
          $region47: #{tpu_custom_call.1} parent=40 // loop_footer_branch
            %78 = sbr.rel target = $region43
          $region48: #{tpu_custom_call.1} parent=40 // loop_exit
            _
        $region41: #{tpu_custom_call.1} parent=32 // pred_fallthru
          _
      $region33: #{tpu_custom_call.1} parent=28 // pred_fallthru
        _
      %101 = vnop
    $region29: #{tpu_custom_call.1} parent=1 // pred_fallthru
      _
    // Predicated region
    $region60: #{tpu_custom_call.1} parent=1 // pred_check
      _
    $region61: #{tpu_custom_call.1} parent=1 // pred_check_branch
      %103 = sbr.rel (0) target = $region63
    $region62: #{tpu_custom_call.1} parent=1 // pred_region
      _
    $region63: #{tpu_custom_call.1} parent=1 // pred_fallthru
      _
    %104 = vsyncpa [#allocation4], 1

</llo_original>
